<compile_context>
chip_gen: v6e
topology: v6e:2x2x1
jax: 0.10.0
libtpu: 0.0.40
codegen_flags: <defaults>
</compile_context>

<pallas_src>
import jax
import jax.numpy as jnp
from jax import lax
from jax.experimental import pallas as pl
from jax.experimental.pallas import tpu as pltpu


_GATHER_SLOTS = 8  # outstanding per-row DMAs in the gather path


def _round_up(x, m):
    return (x + m - 1) // m * m


def _vmem_capacity_bytes():
    """Physical VMEM per TensorCore; conservative 64 MiB (v7x) fallback."""
    try:
        info = pltpu.get_tpu_info()
        cap = getattr(info, "vmem_capacity_bytes", None)
        if isinstance(cap, int) and cap > 0:
            return cap
    except Exception:
        pass
    return 64 * 1024 * 1024


def _num_tensorcores():
    """Best-effort TensorCores-per-chip detection (2 on v7x, else 1)."""
    try:
        info = pltpu.get_tpu_info()
        for attr in ("num_tensorcores", "tensorcore_count", "num_tensor_cores",
                     "tensor_cores_per_chip", "num_cores"):
            v = getattr(info, attr, None)
            if isinstance(v, int) and v > 1:
                return v
    except Exception:
        pass
    try:
        v = getattr(jax.devices()[0], "num_cores", None)
        if isinstance(v, int) and v > 1:
            return v
    except Exception:
        pass
    return 1


def _grid_semantics():
    # v7x: actually shard the row-block axis across both TensorCores.
    if _num_tensorcores() > 1:
        return (pltpu.CORE_PARALLEL,)
    return ("parallel",)


# --------------------------------------------------------------------------
# Kernel 1: VMEM-resident table, one-hot MXU gather (small vocabularies).
# --------------------------------------------------------------------------
def _embedding_kernel_onehot_resident(idx_ref, table_ref, out_ref):
    v = table_ref.shape[0]
    idx = jnp.clip(idx_ref[...], 0, v - 1)                       # (B, 1) int32
    row_ids = lax.broadcasted_iota(jnp.int32, (idx.shape[0], v), 1)
    onehot = (row_ids == idx).astype(table_ref.dtype)            # (B, V)
    out_ref[...] = jnp.dot(
        onehot, table_ref[...], preferred_element_type=jnp.float32
    ).astype(out_ref.dtype)


# --------------------------------------------------------------------------
# Kernel 2: DMA row gather from an HBM-resident table (any vocabulary size).
#   idx_ref   : (N_pad,) int32 in SMEM (scalar-prefetched)
#   table_ref : (V, D) in HBM (memory_space=pl.ANY)
#   out_ref   : (B, D) pipelined VMEM output block
#   stage_ref : (B, D) VMEM staging buffer
#   copy_sem  : (_GATHER_SLOTS,) DMA semaphores
# --------------------------------------------------------------------------
def _embedding_kernel_row_gather(idx_ref, table_ref, out_ref, stage_ref,
                                 copy_sem):
    b = out_ref.shape[0]
    v = table_ref.shape[0]
    base = pl.program_id(0) * b
    nprime = min(_GATHER_SLOTS, b)

    def start_row(r):
        # Clamp in-kernel so a bad/padded index can never drive an OOB DMA.
        row = jnp.clip(idx_ref[base + r], 0, v - 1)
        pltpu.make_async_copy(
            table_ref.at[pl.ds(row, 1), :],
            stage_ref.at[pl.ds(r, 1), :],
            copy_sem.at[r % _GATHER_SLOTS],
        ).start()

    def wait_row(r):
        # Same-shaped descriptor; the wait amount is defined by the shape.
        pltpu.make_async_copy(
            table_ref.at[pl.ds(0, 1), :],
            stage_ref.at[pl.ds(r, 1), :],
            copy_sem.at[r % _GATHER_SLOTS],
        ).wait()

    # Prime the pipeline with `nprime` outstanding row copies.
    @pl.loop(0, nprime)
    def _(r):
        start_row(r)

    # Steady state: wait row r, immediately issue row r + nprime.
    @pl.loop(0, b)
    def _(r):
        wait_row(r)

        @pl.when(r + nprime < b)
        def _():
            start_row(r + nprime)

    # One dense, lane-aligned (B, D) store into the pipelined output block.
    out_ref[...] = stage_ref[...]


# --------------------------------------------------------------------------
# Wrapper
# --------------------------------------------------------------------------
def embedding_forward(table, X, *, block_rows=1024, onehot_max_vocab=512):
    """Gather rows of `table` according to integer indices `X` (any shape)."""
    V, D = table.shape
    itemsize = jnp.dtype(table.dtype).itemsize
    sublane = max(8, 32 // itemsize)          # 8 for f32, 16 for bf16, 32 for int8

    # Flatten + clamp indices (jnp.take semantics; nn.Embedding would raise OOB).
    idx = jnp.clip(X.reshape(-1).astype(jnp.int32), 0, V - 1)
    N = int(idx.shape[0])
    if N == 0:
        return jnp.zeros(X.shape + (D,), table.dtype)

    # ---- generation-aware VMEM budget ------------------------------------
    vmem_cap = _vmem_capacity_bytes()
    vmem_limit = max(16 << 20, (vmem_cap * 3) // 4)      # ~96 MiB v5e/v6e, ~48 MiB v7x

    # ---- rows per grid step -----------------------------------------------
    out_block_target = (2 << 20) if vmem_cap >= (96 << 20) else (1 << 20)
    max_rows = max(sublane,
                   (out_block_target // max(D * itemsize, 1)) // sublane * sublane)
    B = min(block_rows, max_rows, _round_up(N, sublane))
    B = _round_up(B, sublane)

    grid_n = pl.cdiv(N, B)
    N_pad = grid_n * B
    if N_pad != N:
        # Only the int32 index vector is padded; the (N, D) output is NOT,
        # so there is no out[:N] slice / extra HBM round trip.
        idx = jnp.pad(idx, (0, N_pad - N))

    out_shape = jax.ShapeDtypeStruct((N, D), table.dtype)
    dims = _grid_semantics()
    table_bytes = V * D * itemsize

    # Honest VMEM accounting for the resident one-hot path:
    #   resident table + double-buffered lane-padded (B,128) index blocks +
    #   double-buffered (B,D) output blocks + (B, Vpad) f32 one-hot temp + slack.
    onehot_need = (table_bytes
                   + 2 * B * 128 * 4
                   + 2 * B * D * itemsize
                   + B * _round_up(V, 128) * 4
                   + (2 << 20))

    if V <= onehot_max_vocab and onehot_need <= vmem_limit:
        # --- VMEM-resident table, one-hot MXU gather ------------------------
        idx2d = idx.reshape(N_pad, 1)
        out = pl.pallas_call(
            _embedding_kernel_onehot_resident,
            out_shape=out_shape,
            grid_spec=pltpu.PrefetchScalarGridSpec(
                num_scalar_prefetch=0,
                grid=(grid_n,),
                in_specs=[
                    pl.BlockSpec((B, 1), lambda i: (i, 0)),    # index block
                    pl.BlockSpec((V, D), lambda i: (0, 0)),    # resident table
                ],
                out_specs=pl.BlockSpec((B, D), lambda i: (i, 0)),
            ),
            compiler_params=pltpu.CompilerParams(
                dimension_semantics=dims, vmem_limit_bytes=vmem_limit),
        )(idx2d, table)
    else:
        # --- HBM table + per-row DMA gather ---------------------------------
        # TODO(synk): for extremely large N (> ~2^18 indices) the scalar-prefetch
        # SMEM footprint grows; switch the index input to a blocked SMEM
        # BlockSpec in that regime.
        out = pl.pallas_call(
            _embedding_kernel_row_gather,
            out_shape=out_shape,
            grid_spec=pltpu.PrefetchScalarGridSpec(
                num_scalar_prefetch=1,                          # idx -> SMEM
                grid=(grid_n,),
                in_specs=[pl.BlockSpec(memory_space=pl.ANY)],   # table stays in HBM
                out_specs=pl.BlockSpec((B, D), lambda i, idx_ref: (i, 0)),
                scratch_shapes=[
                    pltpu.VMEM((B, D), table.dtype),            # staging buffer
                    pltpu.SemaphoreType.DMA((_GATHER_SLOTS,)),
                ],
            ),
            compiler_params=pltpu.CompilerParams(
                dimension_semantics=dims, vmem_limit_bytes=vmem_limit),
        )(idx, table)

    return out.reshape(X.shape + (D,))


class Embedding:
    """JAX/Pallas mirror of the PyTorch module."""

    def __init__(self, vocab_size, emb_dim, key):
        # nn.Embedding default init: weight ~ N(0, 1)
        self.weight = jax.random.normal(key, (vocab_size, emb_dim), jnp.float32)

    def __call__(self, X):
        return embedding_forward(self.weight, X)


if __name__ == "__main__":
    vocab_size = 32
    emb_dim = 128        # lane-dense last dim (multiple of 128)
    batch, seq = 2, 8

    key = jax.random.PRNGKey(0)
    k_w, k_x = jax.random.split(key)

    model = Embedding(vocab_size, emb_dim, k_w)
    X = jax.random.randint(k_x, (batch, seq), 0, vocab_size, dtype=jnp.int32)

    out = model(X)
    out = jax.block_until_ready(out)

    # sanity check against plain-JAX reference gather
    ref = jnp.take(model.weight, X, axis=0)
    assert out.shape == (batch, seq, emb_dim)
    assert out.dtype == jnp.float32
    assert jnp.allclose(out, ref)

    print("KERNEL_OK")
</pallas_src>

<mosaic_0001>
module attributes {stable_mosaic.version = 11 : i64} {
  func.func @_embedding_kernel_onehot_resident(%arg0: i32, %arg1: memref<16x1xi32, #tpu.memory_space<vmem>>, %arg2: memref<32x128xf32, #tpu.memory_space<vmem>>, %arg3: memref<16x128xf32, #tpu.memory_space<vmem>>) attributes {dimension_semantics = [#tpu.dimension_semantics<parallel>], iteration_bounds = array<i64: 1>, scalar_prefetch = 0 : i64, scratch_operands = 0 : i64, tpu.core_type = #tpu.core_type<tc>, window_params = [{transform_indices = @transform_0, window_bounds = array<i64: 16, 1>}, {pipeline_mode = #tpu.pipeline_mode<synchronous>, transform_indices = @transform_1, window_bounds = array<i64: 32, 128>}, {transform_indices = @transform_2, window_bounds = array<i64: 16, 128>}]} {
    %c0 = arith.constant 0 : index
    %c0_0 = arith.constant 0 : index
    %0 = vector.load %arg1[%c0, %c0_0] : memref<16x1xi32, #tpu.memory_space<vmem>>, vector<16x1xi32>
    %c0_i32 = arith.constant 0 : i32
    %c31_i32 = arith.constant 31 : i32
    %1 = vector.broadcast %c0_i32 : i32 to vector<16x1xi32>
    %2 = arith.maxsi %1, %0 : vector<16x1xi32>
    %3 = vector.broadcast %c31_i32 : i32 to vector<16x1xi32>
    %4 = arith.minsi %3, %2 : vector<16x1xi32>
    %5 = tpu.iota {dimensions = array<i32: 1>} : vector<16x32xi32>
    %6 = vector.broadcast %4 : vector<16x1xi32> to vector<16x32xi32>
    %7 = arith.cmpi eq, %5, %6 : vector<16x32xi32>
    %8 = arith.extui %7 : vector<16x32xi1> to vector<16x32xi32>
    %9 = arith.sitofp %8 : vector<16x32xi32> to vector<16x32xf32>
    %c0_1 = arith.constant 0 : index
    %c0_2 = arith.constant 0 : index
    %10 = vector.load %arg2[%c0_1, %c0_2] : memref<32x128xf32, #tpu.memory_space<vmem>>, vector<32x128xf32>
    %cst = arith.constant dense<0.000000e+00> : vector<16x128xf32>
    %11 = tpu.matmul %9, %10, %cst {dimension_numbers = #tpu.dot_dimension_numbers<[1], [0], [0], [1], [0, 0, 1, 1], [], []>} : vector<16x32xf32>, vector<32x128xf32>, vector<16x128xf32> -> vector<16x128xf32>
    %c0_3 = arith.constant 0 : index
    %c0_4 = arith.constant 0 : index
    %12 = vector.load %arg3[%c0_3, %c0_4] : memref<16x128xf32, #tpu.memory_space<vmem>>, vector<16x128xf32>
    tpu.vector_store %arg3[%c0_3, %c0_4], %11 {strides = array<i32>} : memref<16x128xf32, #tpu.memory_space<vmem>>, vector<16x128xf32>,
    return
  }
  func.func @transform_0(%arg0: i32) -> (i32, i32) {
    %c0_i32 = arith.constant 0 : i32
    %c0_i32_0 = arith.constant 0 : i32
    return %arg0, %c0_i32 : i32, i32
  }
  func.func @transform_1(%arg0: i32) -> (i32, i32) {
    %c0_i32 = arith.constant 0 : i32
    %c0_i32_0 = arith.constant 0 : i32
    %c0_i32_1 = arith.constant 0 : i32
    return %c0_i32, %c0_i32_0 : i32, i32
  }
  func.func @transform_2(%arg0: i32) -> (i32, i32) {
    %c0_i32 = arith.constant 0 : i32
    %c0_i32_0 = arith.constant 0 : i32
    return %arg0, %c0_i32 : i32, i32
  }
}

</mosaic_0001>

<llo_original>
// kernel: tpu_custom_call.1
$region0: #{tpu_custom_call.1}
  #allocation0 [shape = 'u32[]', space=smem, size = 0x4, offset = 0x4, fixed_abs, tag = 'smem constant byte address 0x4 - core index']
  #allocation1 [shape = 'u32[144,128]{1,0:T(1,128)}', space=vmem, size = 0x12000, scoped, tag = 'internal scratch']
  %s0 = inlined_call_operand.vmem [shape: s32[16,1], index: 0, kind: input, shape index: {}]
  %s1 = inlined_call_operand.hbm [shape: f32[32,128], index: 1, kind: input, shape index: {}]
  %s2 = inlined_call_operand.hbm [shape: f32[16,128], index: 2, kind: output, shape index: {}]
  %s3 = sld [smem:[#allocation0]]
  $region22: #{tpu_custom_call.1} parent=0
    _
  %s5 = ssub.s32 1, %s3
  %s6 = scalar_select 0, %s5, %s3
  $region1: #{tpu_custom_call.1} parent=0
    #allocation2 [shape = 'u8[16384]{0}', space=vmem, size = 0x4000, scoped, tag = 'input window, operand 1, single buffered']
    #allocation3 [shape = 's32[1]{0}', space=sflag, size = 0x4, scoped, tag = 'scoped memory for tpu_custom_call.1']
    #allocation4 [shape = 's32[1]{0}', space=sflag, size = 0x4, scoped, tag = 'scoped memory for tpu_custom_call.1']
    #allocation5 [shape = 'u8[8192]{0}', space=vmem, size = 0x2000, scoped, tag = 'output window, operand 0, single buffered']
    %7 = vsyncpa [#allocation3], 0
    %8 = vsyncpa [#allocation4], 0
    // Predicated region
    $region2: #{tpu_custom_call.1} parent=1 // pred_check
      _
    $region3: #{tpu_custom_call.1} parent=1 // pred_check_branch
      %10 = sbr.rel (0) target = $region5
    $region4: #{tpu_custom_call.1} parent=1 // pred_region
      _
    $region5: #{tpu_custom_call.1} parent=1 // pred_fallthru
      _
    // Predicated region
    $region6: #{tpu_custom_call.1} parent=1 // pred_check
      _
    $region7: #{tpu_custom_call.1} parent=1 // pred_check_branch
      %12 = sbr.rel (0) target = $region9
    $region8: #{tpu_custom_call.1} parent=1 // pred_region
      %s14 = ssub.s32 512, 512
      %15 = vsyncadd [#allocation3], %s14
      %s16 = sshll.u32 [#allocation2], 4
      %s17 = int_to_ptr.vmem [resolvable:$true] %s16
      %22 = dma.hbm_to_vmem [thread:$0]  %s1, 512, %s17, [#allocation3], 128, 128, 8
    $region9: #{tpu_custom_call.1} parent=1 // pred_fallthru
      _
    // Predicated region
    $region10: #{tpu_custom_call.1} parent=1 // pred_check
      _
    $region11: #{tpu_custom_call.1} parent=1 // pred_check_branch
      %24 = sbr.rel (0) target = $region13
    $region12: #{tpu_custom_call.1} parent=1 // pred_region
      %25 = dma.done [#allocation3], 512
    $region13: #{tpu_custom_call.1} parent=1 // pred_fallthru
      _
    %v26 = vld [vmem:[%s0] sm:$0xff]
    %v27 = vld [vmem:[%s0 + $0x8] sm:$0xff]
    %vm28 = vcmp.gt.s32.totalorder %v26, 0
    %v29 = vsel %vm28, %v26, 0
    %vm30 = vcmp.gt.s32.totalorder %v27, 0
    %v31 = vsel %vm30, %v27, 0
    %vm32 = vcmp.lt.s32.totalorder %v29, 31
    %v33 = vsel %vm32, %v29, 31
    %vm34 = vcmp.lt.s32.totalorder %v31, 31
    %v35 = vsel %vm34, %v31, 31
    %v36 = vlaneseq
    %v37 = vand.u32 %v36, 127
    %38 = vset.pattern.permute.xlu0 0
    %39 = vperm.xlu0 %38, %v33
    %v40 = vpop.permute.xlu0 %39
    %41 = vset.pattern.permute.xlu0 0
    %42 = vperm.xlu0 %41, %v35
    %v43 = vpop.permute.xlu0 %42
    %vm44 = vcmp.eq.s32.totalorder %v37, %v40
    %vm45 = vcmp.eq.s32.totalorder %v37, %v43
    %v46 = vsel %vm44, 1, 0
    %v47 = vsel %vm45, 1, 0
    %v48 = vcvt.s32.f32 %v46
    %v49 = vcvt.s32.f32 %v47
    %v50 = vld [vmem:[#allocation2] sm:$0xff]
    %v51 = vld [vmem:[#allocation2 + $0x8] sm:$0xff]
    %v52 = vld [vmem:[#allocation2 + $0x10] sm:$0xff]
    %v53 = vld [vmem:[#allocation2 + $0x18] sm:$0xff]
    %vm54 = vcmask 261120
    %v56 = vsel %vm54, %v48, 0
    %v59 = vsel %vm54, %v49, 0
    %61 = vmatprep.subr.mxu0 0.0
    %62 = vmatpush1.msra.mxu0 0.0
    %63 = vmatprep.subr.mxu0 0.0
    %64 = vmatpush1.msra.mxu0 0.0
    %65 = vmatprep.subr.mxu0 0.0
    %66 = vmatpush1.msra.mxu0 0.0
    %67 = vmatprep.subr.mxu0 0.0
    %68 = vmatpush1.msra.mxu0 0.0
    %69 = vmatprep.subr.mxu0 0.0
    %70 = vmatpush1.msra.mxu0 0.0
    %71 = vmatprep.subr.mxu0 0.0
    %72 = vmatpush1.msra.mxu0 0.0
    %73 = vmatprep.subr.mxu0 0.0
    %74 = vmatpush1.msra.mxu0 0.0
    %75 = vmatprep.subr.mxu0 0.0
    %76 = vmatpush1.msra.mxu0 0.0
    %77 = vmatprep.subr.mxu0 0.0
    %78 = vmatpush1.msra.mxu0 0.0
    %79 = vmatprep.subr.mxu0 0.0
    %80 = vmatpush1.msra.mxu0 0.0
    %81 = vmatprep.subr.mxu0 0.0
    %82 = vmatpush1.msra.mxu0 0.0
    %83 = vmatprep.subr.mxu0 0.0
    %84 = vmatpush1.msra.mxu0 0.0
    %85 = vmatprep.subr.mxu0 0.0
    %86 = vmatpush1.msra.mxu0 %v53
    %87 = vmatprep.subr.mxu0 0.0
    %88 = vmatpush1.msra.mxu0 %v52
    %89 = vmatprep.subr.mxu0 0.0
    %90 = vmatpush1.msra.mxu0 %v51
    %91 = vmatprep.subr.mxu0 0.0
    %92 = vmatpush1.msra.mxu0 %v50
    %93 = vmatprep.subr.mxu0 0.0
    %94 = vmatpush2.msra.mxu0 0.0
    %95 = vmatprep.subr.mxu0 0.0
    %96 = vmatpush2.msra.mxu0 0.0
    %97 = vmatprep.subr.mxu0 0.0
    %98 = vmatpush2.msra.mxu0 0.0
    %99 = vmatprep.subr.mxu0 0.0
    %100 = vmatpush2.msra.mxu0 0.0
    %101 = vmatprep.subr.mxu0 0.0
    %102 = vmatpush2.msra.mxu0 0.0
    %103 = vmatprep.subr.mxu0 0.0
    %104 = vmatpush2.msra.mxu0 0.0
    %105 = vmatprep.subr.mxu0 0.0
    %106 = vmatpush2.msra.mxu0 0.0
    %107 = vmatprep.subr.mxu0 0.0
    %108 = vmatpush2.msra.mxu0 0.0
    %109 = vmatprep.subr.mxu0 0.0
    %110 = vmatpush2.msra.mxu0 0.0
    %111 = vmatprep.subr.mxu0 0.0
    %112 = vmatpush2.msra.mxu0 0.0
    %113 = vmatprep.subr.mxu0 0.0
    %114 = vmatpush2.msra.mxu0 0.0
    %115 = vmatprep.subr.mxu0 0.0
    %116 = vmatpush2.msra.mxu0 0.0
    %117 = vmatprep.subr.mxu0 0.0
    %118 = vmatpush2.msra.mxu0 0.0
    %119 = vmatprep.subr.mxu0 0.0
    %120 = vmatpush2.msra.mxu0 0.0
    %121 = vmatprep.subr.mxu0 0.0
    %122 = vmatpush2.msra.mxu0 0.0
    %123 = vmatprep.subr.mxu0 0.0
    %124 = vmatpush2.msra.mxu0 0.0
    %125 = vmatprep.mubr.f32.mxu0 0.0
    %126 = vmatmul.mubr.f32.gmra.mxu0 %v56
    %v127 = vpop.f32.mrf.mxu0
    %v128 = vadd.f32 0.0, %v127
    %v129 = vpop.f32.mrf.mxu0
    %130 = vmatprep.mubr.f32.mxu0 0.0
    %131 = vmatmul.mubr.f32.gmra.mxu0 %v59
    %v132 = vpop.f32.mrf.mxu0
    %v133 = vadd.f32 0.0, %v132
    %v134 = vpop.f32.mrf.mxu0
    %135 = vdwg.mxu0
    %136 = vst [vmem:[#allocation5] sm:$0xff] %v128
    %137 = vst [vmem:[#allocation5 + $0x8] sm:$0xff] %v133
    // Predicated region
    $region14: #{tpu_custom_call.1} parent=1 // pred_check
      _
    $region15: #{tpu_custom_call.1} parent=1 // pred_check_branch
      %139 = sbr.rel (0) target = $region17
    $region16: #{tpu_custom_call.1} parent=1 // pred_region
      %s141 = ssub.s32 256, 256
      %142 = vsyncadd [#allocation4], %s141
      %s143 = sshll.u32 [#allocation5], 4
      %s144 = int_to_ptr.vmem [resolvable:$true] %s143
      %149 = dma.vmem_to_hbm [thread:$0]  %s144, 256, %s2, [#allocation4], 128, 128, 8
    $region17: #{tpu_custom_call.1} parent=1 // pred_fallthru
      _
    // Predicated region
    $region18: #{tpu_custom_call.1} parent=1 // pred_check
      _
    $region19: #{tpu_custom_call.1} parent=1 // pred_check_branch
      %151 = sbr.rel (0) target = $region21
    $region20: #{tpu_custom_call.1} parent=1 // pred_region
      %152 = dma.done [#allocation4], 256
    $region21: #{tpu_custom_call.1} parent=1 // pred_fallthru
      _
    %153 = vsyncpa [#allocation3], 1
    %154 = vsyncpa [#allocation4], 1

</llo_original>
